<compile_context>
chip_gen: v5e
topology: v5e:2x2
jax: 0.10.0
libtpu: 0.0.40
codegen_flags: <defaults>
</compile_context>

<pallas_src>
import math
import numpy as np
import jax
import jax.numpy as jnp
from jax.experimental import pallas as pl
from jax.experimental.pallas import tpu as pltpu


# ----------------------------------------------------------------------------
# Deterministic DCT-filter construction (mirror of get_dct_filter / build_filter)
# ----------------------------------------------------------------------------
def _build_filter(pos, freq, POS):
    result = math.cos(math.pi * freq * (pos + 0.5) / POS) / math.sqrt(POS)
    if freq == 0:
        return result
    return result * math.sqrt(2)


def get_dct_filter(tile_size_x, tile_size_y, mapper_x, mapper_y, channel):
    assert len(mapper_x) == len(mapper_y)
    assert channel % len(mapper_x) == 0
    dct_filter = np.zeros((channel, tile_size_x, tile_size_y), dtype=np.float32)
    c_part = channel // len(mapper_x)
    for i, (u_x, v_y) in enumerate(zip(mapper_x, mapper_y)):
        for t_x in range(tile_size_x):
            for t_y in range(tile_size_y):
                dct_filter[i * c_part:(i + 1) * c_part, t_x, t_y] = (
                    _build_filter(t_x, u_x, tile_size_x)
                    * _build_filter(t_y, v_y, tile_size_y)
                )
    return jnp.asarray(dct_filter)


# ----------------------------------------------------------------------------
# Pallas kernel: blocked-batch elementwise multiply + spatial (sublane) sum
# ----------------------------------------------------------------------------
def _round_up(v, m):
    return (v + m - 1) // m * m


def _dct_pool_kernel(x_ref, w_ref, o_ref):
    # x_ref: (TB, HW, C)  current batch block, channels on the lane axis
    # w_ref: (HW, C)      DCT filter bank (constant block index across the grid,
    #                     so it is only DMA'd once; double-buffering it merely
    #                     costs a little VMEM, which is negligible here)
    # o_ref: (TB, C)      per-grid-step, lane-dense output block
    x = x_ref[...].astype(jnp.float32)
    w = w_ref[...].astype(jnp.float32)
    # Elementwise multiply on the VPU; reduce over the spatial axis (sublanes /
    # across vregs).  Accumulation stays in f32 even for bf16 inputs.
    o_ref[...] = jnp.sum(x * w[None], axis=1).astype(o_ref.dtype)


def multi_spectral_dct_layer(x, weight, *, block_batch=32,
                             vmem_budget_bytes=40 * 1024 * 1024):
    """x: (N, C, H, W) float32/bf16; weight: (C, H, W) -> (N, C) float32."""
    N, C, H, W = x.shape
    assert weight.shape == (C, H, W)
    HW = H * W

    # Channels-last, lane-dense layout (layout plumbing done once in XLA).
    xr = jnp.transpose(x, (0, 2, 3, 1)).reshape(N, HW, C)
    wr = jnp.transpose(weight, (1, 2, 0)).reshape(HW, C).astype(jnp.float32)

    # ---- choose the batch block TB against the VMEM budget -----------------
    # Padded VMEM tile sizes: last dim pads to 128 lanes, 2nd-to-last to 8.
    lane_c = _round_up(C, 128)
    sub_hw = _round_up(HW, 8)
    x_item = jnp.dtype(xr.dtype).itemsize
    w_vmem = 2 * sub_hw * lane_c * 4                      # double-buffered weight

    if N >= 8:
        TB = min(_round_up(block_batch, 8), _round_up(N, 8))
    else:
        TB = N                                            # tiny batch: one step

    def vmem_estimate(tb):
        x_vmem = 2 * tb * sub_hw * lane_c * x_item        # double-buffered input
        o_vmem = 2 * _round_up(tb, 8) * lane_c * 4        # double-buffered output
        return x_vmem + w_vmem + o_vmem

    while N >= 8 and TB > 8 and vmem_estimate(TB) > vmem_budget_bytes:
        TB = max(8, _round_up(TB // 2, 8))

    Npad = _round_up(N, TB)
    if Npad != N:
        xr = jnp.pad(xr, ((0, Npad - N), (0, 0), (0, 0)))

    # Explicit scoped-VMEM limit (>= estimate, <= ~48 MiB so it also fits v7x).
    vmem_limit = int(min(max(vmem_estimate(TB) * 5 // 4 + (2 << 20), 32 << 20),
                         48 << 20))

    out = pl.pallas_call(
        _dct_pool_kernel,
        out_shape=jax.ShapeDtypeStruct((Npad, C), jnp.float32),
        grid_spec=pltpu.PrefetchScalarGridSpec(
            num_scalar_prefetch=0,
            grid=(Npad // TB,),
            in_specs=[
                pl.BlockSpec((TB, HW, C), lambda i: (i, 0, 0)),
                pl.BlockSpec((HW, C), lambda i: (0, 0)),
            ],
            out_specs=pl.BlockSpec((TB, C), lambda i: (i, 0)),
        ),
        compiler_params=pltpu.CompilerParams(
            dimension_semantics=("parallel",),   # independent batch blocks -> megacore on v7x
            vmem_limit_bytes=vmem_limit,
        ),
    )(xr, wr)

    return out[:N] if Npad != N else out


# ----------------------------------------------------------------------------
# Demo / self-check
# ----------------------------------------------------------------------------
if __name__ == "__main__":
    # Small shapes consistent with the module: N=2, C=4, H=W=16, 2 DCT frequencies.
    N, C, H, W = 2, 4, 16, 16
    mapper_x = [0, 1]
    mapper_y = [0, 1]

    weight = get_dct_filter(H, W, mapper_x, mapper_y, C)  # (C, H, W)

    key = jax.random.PRNGKey(0)
    x = jax.random.normal(key, (N, C, H, W), dtype=jnp.float32)

    out = multi_spectral_dct_layer(x, weight)
    out = jax.block_until_ready(out)

    # Reference check against plain-JAX semantics (same as the PyTorch forward).
    ref = jnp.sum(x.astype(jnp.float32) * weight[None], axis=(2, 3))
    assert out.shape == (N, C)
    np.testing.assert_allclose(np.asarray(out), np.asarray(ref), rtol=1e-5, atol=1e-5)

    print("KERNEL_OK")
</pallas_src>

<mosaic_0001>
module attributes {stable_mosaic.version = 11 : i64} {
  func.func @_dct_pool_kernel(%arg0: i32, %arg1: memref<2x256x4xf32, #tpu.memory_space<vmem>>, %arg2: memref<256x4xf32, #tpu.memory_space<vmem>>, %arg3: memref<2x4xf32, #tpu.memory_space<vmem>>) attributes {dimension_semantics = [#tpu.dimension_semantics<parallel>], iteration_bounds = array<i64: 1>, scalar_prefetch = 0 : i64, scratch_operands = 0 : i64, tpu.core_type = #tpu.core_type<tc>, window_params = [{transform_indices = @transform_0, window_bounds = array<i64: 2, 256, 4>}, {pipeline_mode = #tpu.pipeline_mode<synchronous>, transform_indices = @transform_1, window_bounds = array<i64: 256, 4>}, {transform_indices = @transform_2, window_bounds = array<i64: 2, 4>}]} {
    %c0 = arith.constant 0 : index
    %c0_0 = arith.constant 0 : index
    %c0_1 = arith.constant 0 : index
    %0 = vector.load %arg1[%c0, %c0_0, %c0_1] : memref<2x256x4xf32, #tpu.memory_space<vmem>>, vector<2x256x4xf32>
    %c0_2 = arith.constant 0 : index
    %c0_3 = arith.constant 0 : index
    %1 = vector.load %arg2[%c0_2, %c0_3] : memref<256x4xf32, #tpu.memory_space<vmem>>, vector<256x4xf32>
    %2 = vector.shape_cast %1 : vector<256x4xf32> to vector<1x256x4xf32>
    %3 = vector.broadcast %2 : vector<1x256x4xf32> to vector<2x256x4xf32>
    %4 = arith.mulf %0, %3 : vector<2x256x4xf32>
    %cst = arith.constant dense<0.000000e+00> : vector<2x4xf32>
    %5 = vector.multi_reduction <add>, %4, %cst [1] : vector<2x256x4xf32> to vector<2x4xf32>
    %c0_4 = arith.constant 0 : index
    %c0_5 = arith.constant 0 : index
    %6 = vector.load %arg3[%c0_4, %c0_5] : memref<2x4xf32, #tpu.memory_space<vmem>>, vector<2x4xf32>
    tpu.vector_store %arg3[%c0_4, %c0_5], %5 {strides = array<i32>} : memref<2x4xf32, #tpu.memory_space<vmem>>, vector<2x4xf32>,
    return
  }
  func.func @transform_0(%arg0: i32) -> (i32, i32, i32) {
    %c0_i32 = arith.constant 0 : i32
    %c0_i32_0 = arith.constant 0 : i32
    %c0_i32_1 = arith.constant 0 : i32
    return %arg0, %c0_i32, %c0_i32_0 : i32, i32, i32
  }
  func.func @transform_1(%arg0: i32) -> (i32, i32) {
    %c0_i32 = arith.constant 0 : i32
    %c0_i32_0 = arith.constant 0 : i32
    %c0_i32_1 = arith.constant 0 : i32
    return %c0_i32, %c0_i32_0 : i32, i32
  }
  func.func @transform_2(%arg0: i32) -> (i32, i32) {
    %c0_i32 = arith.constant 0 : i32
    %c0_i32_0 = arith.constant 0 : i32
    return %arg0, %c0_i32 : i32, i32
  }
}

</mosaic_0001>

<llo_original>
// kernel: tpu_custom_call.1
$region0: #{tpu_custom_call.1}
  #allocation0 [shape = 'u32[]', space=smem, size = 0x4, offset = 0x4, fixed_abs, tag = 'smem constant byte address 0x4 - core index']
  #allocation1 [shape = 'u32[72,128]{1,0:T(1,128)}', space=vmem, size = 0x9000, scoped, tag = 'internal scratch']
  %s0 = inlined_call_operand.vmem [shape: f32[2,256,4], index: 0, kind: input, shape index: {}]
  %s1 = inlined_call_operand.vmem [shape: f32[256,4], index: 1, kind: input, shape index: {}]
  %s2 = inlined_call_operand.hbm [shape: f32[2,4], index: 2, kind: output, shape index: {}]
  %s3 = sld [smem:[#allocation0]]
  $region18: #{tpu_custom_call.1} parent=0
    _
  %s5 = ssub.s32 1, %s3
  %s6 = scalar_select 0, %s5, %s3
  $region1: #{tpu_custom_call.1} parent=0
    #allocation2 [shape = 'u8[1024]{0}', space=vmem, size = 0x400, scoped, tag = 'output window, operand 0, single buffered']
    #allocation3 [shape = 's32[1]{0}', space=sflag, size = 0x4, scoped, tag = 'scoped memory for tpu_custom_call.1']
    %7 = vsyncpa [#allocation3], 0
    // Predicated region
    $region2: #{tpu_custom_call.1} parent=1 // pred_check
      _
    $region3: #{tpu_custom_call.1} parent=1 // pred_check_branch
      %9 = sbr.rel (0) target = $region5
    $region4: #{tpu_custom_call.1} parent=1 // pred_region
      _
    $region5: #{tpu_custom_call.1} parent=1 // pred_fallthru
      _
    // Predicated region
    $region6: #{tpu_custom_call.1} parent=1 // pred_check
      _
    $region7: #{tpu_custom_call.1} parent=1 // pred_check_branch
      %11 = sbr.rel (0) target = $region9
    $region8: #{tpu_custom_call.1} parent=1 // pred_region
      _
    $region9: #{tpu_custom_call.1} parent=1 // pred_fallthru
      _
    %v12 = vld [vmem:[%s0] sm:$0xff]
    %v13 = vld [vmem:[%s0 + $0x8] sm:$0xff]
    %v14 = vld [vmem:[%s0 + $0x10] sm:$0xff]
    %v15 = vld [vmem:[%s0 + $0x18] sm:$0xff]
    %v16 = vld [vmem:[%s0 + $0x20] sm:$0xff]
    %v17 = vld [vmem:[%s0 + $0x28] sm:$0xff]
    %v18 = vld [vmem:[%s0 + $0x30] sm:$0xff]
    %v19 = vld [vmem:[%s0 + $0x38] sm:$0xff]
    %v20 = vld [vmem:[%s0 + $0x40] sm:$0xff]
    %v21 = vld [vmem:[%s0 + $0x48] sm:$0xff]
    %v22 = vld [vmem:[%s0 + $0x50] sm:$0xff]
    %v23 = vld [vmem:[%s0 + $0x58] sm:$0xff]
    %v24 = vld [vmem:[%s0 + $0x60] sm:$0xff]
    %v25 = vld [vmem:[%s0 + $0x68] sm:$0xff]
    %v26 = vld [vmem:[%s0 + $0x70] sm:$0xff]
    %v27 = vld [vmem:[%s0 + $0x78] sm:$0xff]
    %v28 = vld [vmem:[%s0 + $0x80] sm:$0xff]
    %v29 = vld [vmem:[%s0 + $0x88] sm:$0xff]
    %v30 = vld [vmem:[%s0 + $0x90] sm:$0xff]
    %v31 = vld [vmem:[%s0 + $0x98] sm:$0xff]
    %v32 = vld [vmem:[%s0 + $0xa0] sm:$0xff]
    %v33 = vld [vmem:[%s0 + $0xa8] sm:$0xff]
    %v34 = vld [vmem:[%s0 + $0xb0] sm:$0xff]
    %v35 = vld [vmem:[%s0 + $0xb8] sm:$0xff]
    %v36 = vld [vmem:[%s0 + $0xc0] sm:$0xff]
    %v37 = vld [vmem:[%s0 + $0xc8] sm:$0xff]
    %v38 = vld [vmem:[%s0 + $0xd0] sm:$0xff]
    %v39 = vld [vmem:[%s0 + $0xd8] sm:$0xff]
    %v40 = vld [vmem:[%s0 + $0xe0] sm:$0xff]
    %v41 = vld [vmem:[%s0 + $0xe8] sm:$0xff]
    %v42 = vld [vmem:[%s0 + $0xf0] sm:$0xff]
    %v43 = vld [vmem:[%s0 + $0xf8] sm:$0xff]
    %v44 = vld [vmem:[%s0 + $0x100] sm:$0xff]
    %v45 = vld [vmem:[%s0 + $0x108] sm:$0xff]
    %v46 = vld [vmem:[%s0 + $0x110] sm:$0xff]
    %v47 = vld [vmem:[%s0 + $0x118] sm:$0xff]
    %v48 = vld [vmem:[%s0 + $0x120] sm:$0xff]
    %v49 = vld [vmem:[%s0 + $0x128] sm:$0xff]
    %v50 = vld [vmem:[%s0 + $0x130] sm:$0xff]
    %v51 = vld [vmem:[%s0 + $0x138] sm:$0xff]
    %v52 = vld [vmem:[%s0 + $0x140] sm:$0xff]
    %v53 = vld [vmem:[%s0 + $0x148] sm:$0xff]
    %v54 = vld [vmem:[%s0 + $0x150] sm:$0xff]
    %v55 = vld [vmem:[%s0 + $0x158] sm:$0xff]
    %v56 = vld [vmem:[%s0 + $0x160] sm:$0xff]
    %v57 = vld [vmem:[%s0 + $0x168] sm:$0xff]
    %v58 = vld [vmem:[%s0 + $0x170] sm:$0xff]
    %v59 = vld [vmem:[%s0 + $0x178] sm:$0xff]
    %v60 = vld [vmem:[%s0 + $0x180] sm:$0xff]
    %v61 = vld [vmem:[%s0 + $0x188] sm:$0xff]
    %v62 = vld [vmem:[%s0 + $0x190] sm:$0xff]
    %v63 = vld [vmem:[%s0 + $0x198] sm:$0xff]
    %v64 = vld [vmem:[%s0 + $0x1a0] sm:$0xff]
    %v65 = vld [vmem:[%s0 + $0x1a8] sm:$0xff]
    %v66 = vld [vmem:[%s0 + $0x1b0] sm:$0xff]
    %v67 = vld [vmem:[%s0 + $0x1b8] sm:$0xff]
    %v68 = vld [vmem:[%s0 + $0x1c0] sm:$0xff]
    %v69 = vld [vmem:[%s0 + $0x1c8] sm:$0xff]
    %v70 = vld [vmem:[%s0 + $0x1d0] sm:$0xff]
    %v71 = vld [vmem:[%s0 + $0x1d8] sm:$0xff]
    %v72 = vld [vmem:[%s0 + $0x1e0] sm:$0xff]
    %v73 = vld [vmem:[%s0 + $0x1e8] sm:$0xff]
    %v74 = vld [vmem:[%s0 + $0x1f0] sm:$0xff]
    %v75 = vld [vmem:[%s0 + $0x1f8] sm:$0xff]
    %v76 = vld [vmem:[%s1] sm:$0xff]
    %v77 = vld [vmem:[%s1 + $0x8] sm:$0xff]
    %v78 = vld [vmem:[%s1 + $0x10] sm:$0xff]
    %v79 = vld [vmem:[%s1 + $0x18] sm:$0xff]
    %v80 = vld [vmem:[%s1 + $0x20] sm:$0xff]
    %v81 = vld [vmem:[%s1 + $0x28] sm:$0xff]
    %v82 = vld [vmem:[%s1 + $0x30] sm:$0xff]
    %v83 = vld [vmem:[%s1 + $0x38] sm:$0xff]
    %v84 = vld [vmem:[%s1 + $0x40] sm:$0xff]
    %v85 = vld [vmem:[%s1 + $0x48] sm:$0xff]
    %v86 = vld [vmem:[%s1 + $0x50] sm:$0xff]
    %v87 = vld [vmem:[%s1 + $0x58] sm:$0xff]
    %v88 = vld [vmem:[%s1 + $0x60] sm:$0xff]
    %v89 = vld [vmem:[%s1 + $0x68] sm:$0xff]
    %v90 = vld [vmem:[%s1 + $0x70] sm:$0xff]
    %v91 = vld [vmem:[%s1 + $0x78] sm:$0xff]
    %v92 = vld [vmem:[%s1 + $0x80] sm:$0xff]
    %v93 = vld [vmem:[%s1 + $0x88] sm:$0xff]
    %v94 = vld [vmem:[%s1 + $0x90] sm:$0xff]
    %v95 = vld [vmem:[%s1 + $0x98] sm:$0xff]
    %v96 = vld [vmem:[%s1 + $0xa0] sm:$0xff]
    %v97 = vld [vmem:[%s1 + $0xa8] sm:$0xff]
    %v98 = vld [vmem:[%s1 + $0xb0] sm:$0xff]
    %v99 = vld [vmem:[%s1 + $0xb8] sm:$0xff]
    %v100 = vld [vmem:[%s1 + $0xc0] sm:$0xff]
    %v101 = vld [vmem:[%s1 + $0xc8] sm:$0xff]
    %v102 = vld [vmem:[%s1 + $0xd0] sm:$0xff]
    %v103 = vld [vmem:[%s1 + $0xd8] sm:$0xff]
    %v104 = vld [vmem:[%s1 + $0xe0] sm:$0xff]
    %v105 = vld [vmem:[%s1 + $0xe8] sm:$0xff]
    %v106 = vld [vmem:[%s1 + $0xf0] sm:$0xff]
    %v107 = vld [vmem:[%s1 + $0xf8] sm:$0xff]
    %v108 = vmul.f32 %v12, %v76
    %v109 = vmul.f32 %v13, %v77
    %v110 = vmul.f32 %v14, %v78
    %v111 = vmul.f32 %v15, %v79
    %v112 = vmul.f32 %v16, %v80
    %v113 = vmul.f32 %v17, %v81
    %v114 = vmul.f32 %v18, %v82
    %v115 = vmul.f32 %v19, %v83
    %v116 = vmul.f32 %v20, %v84
    %v117 = vmul.f32 %v21, %v85
    %v118 = vmul.f32 %v22, %v86
    %v119 = vmul.f32 %v23, %v87
    %v120 = vmul.f32 %v24, %v88
    %v121 = vmul.f32 %v25, %v89
    %v122 = vmul.f32 %v26, %v90
    %v123 = vmul.f32 %v27, %v91
    %v124 = vmul.f32 %v28, %v92
    %v125 = vmul.f32 %v29, %v93
    %v126 = vmul.f32 %v30, %v94
    %v127 = vmul.f32 %v31, %v95
    %v128 = vmul.f32 %v32, %v96
    %v129 = vmul.f32 %v33, %v97
    %v130 = vmul.f32 %v34, %v98
    %v131 = vmul.f32 %v35, %v99
    %v132 = vmul.f32 %v36, %v100
    %v133 = vmul.f32 %v37, %v101
    %v134 = vmul.f32 %v38, %v102
    %v135 = vmul.f32 %v39, %v103
    %v136 = vmul.f32 %v40, %v104
    %v137 = vmul.f32 %v41, %v105
    %v138 = vmul.f32 %v42, %v106
    %v139 = vmul.f32 %v43, %v107
    %v140 = vmul.f32 %v44, %v76
    %v141 = vmul.f32 %v45, %v77
    %v142 = vmul.f32 %v46, %v78
    %v143 = vmul.f32 %v47, %v79
    %v144 = vmul.f32 %v48, %v80
    %v145 = vmul.f32 %v49, %v81
    %v146 = vmul.f32 %v50, %v82
    %v147 = vmul.f32 %v51, %v83
    %v148 = vmul.f32 %v52, %v84
    %v149 = vmul.f32 %v53, %v85
    %v150 = vmul.f32 %v54, %v86
    %v151 = vmul.f32 %v55, %v87
    %v152 = vmul.f32 %v56, %v88
    %v153 = vmul.f32 %v57, %v89
    %v154 = vmul.f32 %v58, %v90
    %v155 = vmul.f32 %v59, %v91
    %v156 = vmul.f32 %v60, %v92
    %v157 = vmul.f32 %v61, %v93
    %v158 = vmul.f32 %v62, %v94
    %v159 = vmul.f32 %v63, %v95
    %v160 = vmul.f32 %v64, %v96
    %v161 = vmul.f32 %v65, %v97
    %v162 = vmul.f32 %v66, %v98
    %v163 = vmul.f32 %v67, %v99
    %v164 = vmul.f32 %v68, %v100
    %v165 = vmul.f32 %v69, %v101
    %v166 = vmul.f32 %v70, %v102
    %v167 = vmul.f32 %v71, %v103
    %v168 = vmul.f32 %v72, %v104
    %v169 = vmul.f32 %v73, %v105
    %v170 = vmul.f32 %v74, %v106
    %v171 = vmul.f32 %v75, %v107
    %vm172 = vcmask 31744
    %v173 = vsel %vm172, %v108, 0.0
    %v174 = vsel %vm172, %v109, 0.0
    %v175 = vadd.f32 %v173, %v174
    %v176 = vsel %vm172, %v110, 0.0
    %v177 = vadd.f32 %v175, %v176
    %v178 = vsel %vm172, %v111, 0.0
    %v179 = vadd.f32 %v177, %v178
    %v180 = vsel %vm172, %v112, 0.0
    %v181 = vadd.f32 %v179, %v180
    %v182 = vsel %vm172, %v113, 0.0
    %v183 = vadd.f32 %v181, %v182
    %v184 = vsel %vm172, %v114, 0.0
    %v185 = vadd.f32 %v183, %v184
    %v186 = vsel %vm172, %v115, 0.0
    %v187 = vadd.f32 %v185, %v186
    %v188 = vsel %vm172, %v116, 0.0
    %v189 = vadd.f32 %v187, %v188
    %v190 = vsel %vm172, %v117, 0.0
    %v191 = vadd.f32 %v189, %v190
    %v192 = vsel %vm172, %v118, 0.0
    %v193 = vadd.f32 %v191, %v192
    %v194 = vsel %vm172, %v119, 0.0
    %v195 = vadd.f32 %v193, %v194
    %v196 = vsel %vm172, %v120, 0.0
    %v197 = vadd.f32 %v195, %v196
    %v198 = vsel %vm172, %v121, 0.0
    %v199 = vadd.f32 %v197, %v198
    %v200 = vsel %vm172, %v122, 0.0
    %v201 = vadd.f32 %v199, %v200
    %v202 = vsel %vm172, %v123, 0.0
    %v203 = vadd.f32 %v201, %v202
    %v204 = vsel %vm172, %v124, 0.0
    %v205 = vadd.f32 %v203, %v204
    %v206 = vsel %vm172, %v125, 0.0
    %v207 = vadd.f32 %v205, %v206
    %v208 = vsel %vm172, %v126, 0.0
    %v209 = vadd.f32 %v207, %v208
    %v210 = vsel %vm172, %v127, 0.0
    %v211 = vadd.f32 %v209, %v210
    %v212 = vsel %vm172, %v128, 0.0
    %v213 = vadd.f32 %v211, %v212
    %v214 = vsel %vm172, %v129, 0.0
    %v215 = vadd.f32 %v213, %v214
    %v216 = vsel %vm172, %v130, 0.0
    %v217 = vadd.f32 %v215, %v216
    %v218 = vsel %vm172, %v131, 0.0
    %v219 = vadd.f32 %v217, %v218
    %v220 = vsel %vm172, %v132, 0.0
    %v221 = vadd.f32 %v219, %v220
    %v222 = vsel %vm172, %v133, 0.0
    %v223 = vadd.f32 %v221, %v222
    %v224 = vsel %vm172, %v134, 0.0
    %v225 = vadd.f32 %v223, %v224
    %v226 = vsel %vm172, %v135, 0.0
    %v227 = vadd.f32 %v225, %v226
    %v228 = vsel %vm172, %v136, 0.0
    %v229 = vadd.f32 %v227, %v228
    %v230 = vsel %vm172, %v137, 0.0
    %v231 = vadd.f32 %v229, %v230
    %v232 = vsel %vm172, %v138, 0.0
    %v233 = vadd.f32 %v231, %v232
    %v234 = vsel %vm172, %v139, 0.0
    %v235 = vadd.f32 %v233, %v234
    %v236 = vrot.slane %v235, 4
    %v237 = vadd.f32 %v235, %v236
    %v238 = vrot.slane %v237, 2
    %v239 = vadd.f32 %v237, %v238
    %v240 = vrot.slane %v239, 1
    %v241 = vadd.f32 %v239, %v240
    %v242 = vsel %vm172, %v140, 0.0
    %v243 = vsel %vm172, %v141, 0.0
    %v244 = vadd.f32 %v242, %v243
    %v245 = vsel %vm172, %v142, 0.0
    %v246 = vadd.f32 %v244, %v245
    %v247 = vsel %vm172, %v143, 0.0
    %v248 = vadd.f32 %v246, %v247
    %v249 = vsel %vm172, %v144, 0.0
    %v250 = vadd.f32 %v248, %v249
    %v251 = vsel %vm172, %v145, 0.0
    %v252 = vadd.f32 %v250, %v251
    %v253 = vsel %vm172, %v146, 0.0
    %v254 = vadd.f32 %v252, %v253
    %v255 = vsel %vm172, %v147, 0.0
    %v256 = vadd.f32 %v254, %v255
    %v257 = vsel %vm172, %v148, 0.0
    %v258 = vadd.f32 %v256, %v257
    %v259 = vsel %vm172, %v149, 0.0
    %v260 = vadd.f32 %v258, %v259
    %v261 = vsel %vm172, %v150, 0.0
    %v262 = vadd.f32 %v260, %v261
    %v263 = vsel %vm172, %v151, 0.0
    %v264 = vadd.f32 %v262, %v263
    %v265 = vsel %vm172, %v152, 0.0
    %v266 = vadd.f32 %v264, %v265
    %v267 = vsel %vm172, %v153, 0.0
    %v268 = vadd.f32 %v266, %v267
    %v269 = vsel %vm172, %v154, 0.0
    %v270 = vadd.f32 %v268, %v269
    %v271 = vsel %vm172, %v155, 0.0
    %v272 = vadd.f32 %v270, %v271
    %v273 = vsel %vm172, %v156, 0.0
    %v274 = vadd.f32 %v272, %v273
    %v275 = vsel %vm172, %v157, 0.0
    %v276 = vadd.f32 %v274, %v275
    %v277 = vsel %vm172, %v158, 0.0
    %v278 = vadd.f32 %v276, %v277
    %v279 = vsel %vm172, %v159, 0.0
    %v280 = vadd.f32 %v278, %v279
    %v281 = vsel %vm172, %v160, 0.0
    %v282 = vadd.f32 %v280, %v281
    %v283 = vsel %vm172, %v161, 0.0
    %v284 = vadd.f32 %v282, %v283
    %v285 = vsel %vm172, %v162, 0.0
    %v286 = vadd.f32 %v284, %v285
    %v287 = vsel %vm172, %v163, 0.0
    %v288 = vadd.f32 %v286, %v287
    %v289 = vsel %vm172, %v164, 0.0
    %v290 = vadd.f32 %v288, %v289
    %v291 = vsel %vm172, %v165, 0.0
    %v292 = vadd.f32 %v290, %v291
    %v293 = vsel %vm172, %v166, 0.0
    %v294 = vadd.f32 %v292, %v293
    %v295 = vsel %vm172, %v167, 0.0
    %v296 = vadd.f32 %v294, %v295
    %v297 = vsel %vm172, %v168, 0.0
    %v298 = vadd.f32 %v296, %v297
    %v299 = vsel %vm172, %v169, 0.0
    %v300 = vadd.f32 %v298, %v299
    %v301 = vsel %vm172, %v170, 0.0
    %v302 = vadd.f32 %v300, %v301
    %v303 = vsel %vm172, %v171, 0.0
    %v304 = vadd.f32 %v302, %v303
    %v305 = vrot.slane %v304, 4
    %v306 = vadd.f32 %v304, %v305
    %v307 = vrot.slane %v306, 2
    %v308 = vadd.f32 %v306, %v307
    %v309 = vrot.slane %v308, 1
    %v310 = vadd.f32 %v308, %v309
    %vm313 = vcmask 1041409
    %v314 = vsel %vm313, %v310, %v241
    %vm316 = vcmask 25600
    %317 = vst.msk [vmem:[#allocation2] sm:$0x3] %vm316, %v314
    // Predicated region
    $region10: #{tpu_custom_call.1} parent=1 // pred_check
      _
    $region11: #{tpu_custom_call.1} parent=1 // pred_check_branch
      %319 = sbr.rel (0) target = $region13
    $region12: #{tpu_custom_call.1} parent=1 // pred_region
      %321 = vsyncadd [#allocation3], 0
      %s323 = sshll.u32 [#allocation2], 4
      %s324 = int_to_ptr.vmem [resolvable:$true] %s323
      %s325 = sshll.u32 %s2, 4
      %s326 = int_to_ptr.hbm [resolvable:$true] %s325
      %328 = dma.vmem_to_hbm [thread:$0]  %s324, 32, %s326, [#allocation3]
    $region13: #{tpu_custom_call.1} parent=1 // pred_fallthru
      _
    // Predicated region
    $region14: #{tpu_custom_call.1} parent=1 // pred_check
      _
    $region15: #{tpu_custom_call.1} parent=1 // pred_check_branch
      %330 = sbr.rel (0) target = $region17
    $region16: #{tpu_custom_call.1} parent=1 // pred_region
      %332 = dma.done [#allocation3], 32
    $region17: #{tpu_custom_call.1} parent=1 // pred_fallthru
      _
    %333 = vsyncpa [#allocation3], 1

</llo_original>
